<compile_context>
chip_gen: v7x
topology: tpu7x:2x2x1
jax: 0.10.0
libtpu: 0.0.40
codegen_flags: <defaults>
</compile_context>

<pallas_src>
import math
import jax
import jax.numpy as jnp
from jax.experimental import pallas as pl
from jax.experimental.pallas import tpu as pltpu

PAD = 128            # lane width for hidden features / weight output dim
TN_MAX = 1024        # max rows per grid step (amortizes ~0.35us/step; VMEM tiny)
NEG_BIG = -1e30      # padded-lane logit killer (f32; exp underflows cleanly)


def _round_up(n, m):
    return ((n + m - 1) // m) * m


def _pad2(a, rows, cols):
    """Zero-pad a 2-D array up to (rows, cols)."""
    out = jnp.zeros((rows, cols), a.dtype)
    return out.at[: a.shape[0], : a.shape[1]].set(a)


def _row_tiling(N, tn_max=TN_MAX, min_steps=2):
    """Balanced row tiles (multiple of 8 rows), >=min_steps when N allows."""
    n8 = _round_up(N, 8)
    steps = max(pl.cdiv(n8, tn_max), min(min_steps, n8 // 8), 1)
    tn = _round_up(pl.cdiv(n8, steps), 8)
    steps = pl.cdiv(n8, tn)
    return tn, steps, steps * tn


# ---------------- fused Pallas kernel ----------------

def make_fused_kernel(num_layers):
    """Kernel refs: x, w_0 .. w_{L-1}, bias_stack, out."""

    def kernel(x_ref, *refs):
        o_ref = refs[-1]
        bs = refs[-2][...]                              # (L, 128) f32 biases

        h = x_ref[...].astype(jnp.bfloat16)             # (tn, K0)
        y = None
        for i in range(num_layers):
            w = refs[i][...]                            # bf16 (K_i, 128)
            b = bs[i:i + 1, :]                          # (1, 128) f32
            y = jnp.dot(h, w, preferred_element_type=jnp.float32) + b
            if i < num_layers - 1:
                # hidden layer epilogue: relu (BN already folded into w/b)
                h = jnp.maximum(y, 0.0).astype(jnp.bfloat16)

        # final layer: log_softmax. Padded lanes of y equal -1e30 (from the
        # padded bias), so no explicit mask is needed.
        m = jnp.max(y, axis=-1, keepdims=True)
        s = y - m
        lse = jnp.log(jnp.sum(jnp.exp(s), axis=-1, keepdims=True))
        o_ref[...] = (s - lse)[:, : o_ref.shape[-1]].astype(o_ref.dtype)

    return kernel


# ---------------- wrapper ----------------

def ssgc_mlp_forward(x, weights, bias_stack, out_channels, *, tn_max=TN_MAX):
    """x: (N, in_channels) f32.  weights: list of padded bf16 (K_i, 128).
    bias_stack: (num_layers, 128) f32 (final row's padded lanes = -1e30)."""
    N, in_channels = x.shape
    K0 = weights[0].shape[0]                 # round_up(in_channels, 8)
    tn, steps, n_pad = _row_tiling(N, tn_max)

    if n_pad != N or K0 != in_channels:
        x_p = jnp.zeros((n_pad, K0), x.dtype).at[:N, :in_channels].set(x)
    else:
        x_p = x

    num_layers = len(weights)
    kernel = make_fused_kernel(num_layers)

    in_specs = [pl.BlockSpec((tn, K0), lambda i: (i, 0))]           # row-tiled x
    in_specs += [pl.BlockSpec(w.shape, lambda i: (0, 0)) for w in weights]
    in_specs += [pl.BlockSpec(bias_stack.shape, lambda i: (0, 0))]  # resident

    out = pl.pallas_call(
        kernel,
        out_shape=jax.ShapeDtypeStruct((n_pad, out_channels), x.dtype),
        grid_spec=pltpu.PrefetchScalarGridSpec(
            num_scalar_prefetch=0,
            grid=(steps,),
            in_specs=in_specs,
            out_specs=pl.BlockSpec((tn, out_channels), lambda i: (i, 0)),
        ),
        compiler_params=pltpu.CompilerParams(
            dimension_semantics=("parallel",)),
    )(x_p, *weights, bias_stack)

    return out[:N] if n_pad != N else out


# ---------------- parameter construction (deterministic, synthetic) ----------------

def init_linear(key, fan_in, fan_out):
    # mimic torch.nn.Linear default init: U(-1/sqrt(fan_in), 1/sqrt(fan_in))
    kw, kb = jax.random.split(key)
    bound = 1.0 / math.sqrt(fan_in)
    w = jax.random.uniform(kw, (fan_out, fan_in), jnp.float32, -bound, bound)
    b = jax.random.uniform(kb, (fan_out,), jnp.float32, -bound, bound)
    return w, b


def build_params(key, in_channels, hidden_channels, out_channels, num_layers):
    keys = jax.random.split(key, num_layers)
    lins, bns = [], []
    dims = [in_channels] + [hidden_channels] * (num_layers - 1) + [out_channels]
    for i in range(num_layers):
        lins.append(init_linear(keys[i], dims[i], dims[i + 1]))
        if i < num_layers - 1:
            h = dims[i + 1]
            bns.append(dict(gamma=jnp.ones((h,), jnp.float32),
                            beta=jnp.zeros((h,), jnp.float32),
                            mean=jnp.zeros((h,), jnp.float32),
                            var=jnp.ones((h,), jnp.float32),
                            eps=1e-5))
    return lins, bns


def fold_params(lins, bns):
    """One-time: fold eval-mode BN into weights, pre-transpose, pad, cast bf16.

    Returns (weights, bias_stack):
      weights[i]  : bf16 (K_i, 128), K_0 = round_up(in_channels, 8), else 128
      bias_stack  : f32 (num_layers, 128); final row's padded lanes = -1e30
    """
    num_layers = len(lins)
    weights, biases = [], []
    for i, (w, b) in enumerate(lins):
        assert w.shape[0] <= PAD and w.shape[1] <= PAD, \
            "feature dims > 128 need a K-loop (not implemented)"
        if i < num_layers - 1:
            bn = bns[i]
            scale = bn["gamma"] / jnp.sqrt(bn["var"] + bn["eps"])
            shift = bn["beta"] - bn["mean"] * scale
            w_t = w.T * scale[None, :]               # (in, out), BN-scaled
            b_f = b * scale + shift
            b_pad = _pad2(b_f.reshape(1, -1), 1, PAD)
        else:
            w_t = w.T
            # padded lanes of the final bias kill padded logits for free
            b_pad = jnp.full((1, PAD), NEG_BIG, jnp.float32)
            b_pad = b_pad.at[0, : b.shape[0]].set(b)
        rows = _round_up(w_t.shape[0], 8) if i == 0 else PAD
        weights.append(_pad2(w_t, rows, PAD).astype(jnp.bfloat16))
        biases.append(b_pad)
    bias_stack = jnp.concatenate(biases, axis=0)     # (num_layers, 128)
    return weights, bias_stack


# ---------------- main ----------------

if __name__ == "__main__":
    in_channels, hidden_channels, out_channels = 16, 32, 8
    num_layers, dropout = 3, 0.5
    N = 8  # number of nodes / batch rows

    key = jax.random.PRNGKey(0)
    kx, kp = jax.random.split(key)
    x = jax.random.normal(kx, (N, in_channels), jnp.float32)

    lins, bns = build_params(kp, in_channels, hidden_channels,
                             out_channels, num_layers)
    weights, bias_stack = fold_params(lins, bns)     # done once, reused per forward

    out = ssgc_mlp_forward(x, weights, bias_stack, out_channels)
    out = jax.block_until_ready(out)

    # sanity check vs pure-JAX f32 reference (eval-mode semantics).
    # tolerance is relaxed because the kernel's matmul operands are bf16.
    ref = x
    for (w, b), bn in zip(lins[:-1], bns):
        ref = ref @ w.T + b
        scale = bn["gamma"] / jnp.sqrt(bn["var"] + bn["eps"])
        ref = (ref - bn["mean"]) * scale + bn["beta"]
        ref = jnp.maximum(ref, 0.0)
    w, b = lins[-1]
    ref = ref @ w.T + b
    ref = ref - jax.scipy.special.logsumexp(ref, axis=-1, keepdims=True)
    assert out.shape == (N, out_channels)
    assert jnp.allclose(out, ref, atol=5e-2, rtol=5e-2), "mismatch vs reference"

    print("KERNEL_OK")
</pallas_src>

<mosaic_0001>
module attributes {stable_mosaic.version = 11 : i64} {
  func.func @kernel(%arg0: i32, %arg1: memref<8x16xf32, #tpu.memory_space<vmem>>, %arg2: memref<16x128xbf16, #tpu.memory_space<vmem>>, %arg3: memref<128x128xbf16, #tpu.memory_space<vmem>>, %arg4: memref<128x128xbf16, #tpu.memory_space<vmem>>, %arg5: memref<3x128xf32, #tpu.memory_space<vmem>>, %arg6: memref<8x8xf32, #tpu.memory_space<vmem>>) attributes {dimension_semantics = [#tpu.dimension_semantics<parallel>], iteration_bounds = array<i64: 1>, scalar_prefetch = 0 : i64, scratch_operands = 0 : i64, tpu.core_type = #tpu.core_type<tc>, window_params = [{transform_indices = @transform_0, window_bounds = array<i64: 8, 16>}, {pipeline_mode = #tpu.pipeline_mode<synchronous>, transform_indices = @transform_1, window_bounds = array<i64: 16, 128>}, {pipeline_mode = #tpu.pipeline_mode<synchronous>, transform_indices = @transform_2, window_bounds = array<i64: 128, 128>}, {pipeline_mode = #tpu.pipeline_mode<synchronous>, transform_indices = @transform_3, window_bounds = array<i64: 128, 128>}, {pipeline_mode = #tpu.pipeline_mode<synchronous>, transform_indices = @transform_4, window_bounds = array<i64: 3, 128>}, {transform_indices = @transform_5, window_bounds = array<i64: 8, 8>}]} {
    %c0 = arith.constant 0 : index
    %c0_0 = arith.constant 0 : index
    %0 = vector.load %arg5[%c0, %c0_0] : memref<3x128xf32, #tpu.memory_space<vmem>>, vector<3x128xf32>
    %c0_1 = arith.constant 0 : index
    %c0_2 = arith.constant 0 : index
    %1 = vector.load %arg1[%c0_1, %c0_2] : memref<8x16xf32, #tpu.memory_space<vmem>>, vector<8x16xf32>
    %2 = arith.truncf %1 : vector<8x16xf32> to vector<8x16xbf16>
    %c0_3 = arith.constant 0 : index
    %c0_4 = arith.constant 0 : index
    %3 = vector.load %arg2[%c0_3, %c0_4] : memref<16x128xbf16, #tpu.memory_space<vmem>>, vector<16x128xbf16>
    %4 = vector.extract_strided_slice %0 {offsets = [0, 0], sizes = [1, 128], strides = [1, 1]} : vector<3x128xf32> to vector<1x128xf32>
    %cst = arith.constant dense<0.000000e+00> : vector<8x128xf32>
    %5 = tpu.matmul %2, %3, %cst {dimension_numbers = #tpu.dot_dimension_numbers<[1], [0], [0], [1], [0, 0, 1, 1], [], []>} : vector<8x16xbf16>, vector<16x128xbf16>, vector<8x128xf32> -> vector<8x128xf32>
    %6 = vector.broadcast %4 : vector<1x128xf32> to vector<8x128xf32>
    %7 = arith.addf %5, %6 : vector<8x128xf32>
    %cst_5 = arith.constant 0.000000e+00 : f32
    %8 = vector.broadcast %cst_5 : f32 to vector<8x128xf32>
    %9 = arith.maximumf %7, %8 : vector<8x128xf32>
    %10 = arith.truncf %9 : vector<8x128xf32> to vector<8x128xbf16>
    %c0_6 = arith.constant 0 : index
    %c0_7 = arith.constant 0 : index
    %11 = vector.load %arg3[%c0_6, %c0_7] : memref<128x128xbf16, #tpu.memory_space<vmem>>, vector<128x128xbf16>
    %12 = vector.extract_strided_slice %0 {offsets = [1, 0], sizes = [1, 128], strides = [1, 1]} : vector<3x128xf32> to vector<1x128xf32>
    %cst_8 = arith.constant dense<0.000000e+00> : vector<8x128xf32>
    %13 = tpu.matmul %10, %11, %cst_8 {dimension_numbers = #tpu.dot_dimension_numbers<[1], [0], [0], [1], [0, 0, 1, 1], [], []>} : vector<8x128xbf16>, vector<128x128xbf16>, vector<8x128xf32> -> vector<8x128xf32>
    %14 = vector.broadcast %12 : vector<1x128xf32> to vector<8x128xf32>
    %15 = arith.addf %13, %14 : vector<8x128xf32>
    %cst_9 = arith.constant 0.000000e+00 : f32
    %16 = vector.broadcast %cst_9 : f32 to vector<8x128xf32>
    %17 = arith.maximumf %15, %16 : vector<8x128xf32>
    %18 = arith.truncf %17 : vector<8x128xf32> to vector<8x128xbf16>
    %c0_10 = arith.constant 0 : index
    %c0_11 = arith.constant 0 : index
    %19 = vector.load %arg4[%c0_10, %c0_11] : memref<128x128xbf16, #tpu.memory_space<vmem>>, vector<128x128xbf16>
    %20 = vector.extract_strided_slice %0 {offsets = [2, 0], sizes = [1, 128], strides = [1, 1]} : vector<3x128xf32> to vector<1x128xf32>
    %cst_12 = arith.constant dense<0.000000e+00> : vector<8x128xf32>
    %21 = tpu.matmul %18, %19, %cst_12 {dimension_numbers = #tpu.dot_dimension_numbers<[1], [0], [0], [1], [0, 0, 1, 1], [], []>} : vector<8x128xbf16>, vector<128x128xbf16>, vector<8x128xf32> -> vector<8x128xf32>
    %22 = vector.broadcast %20 : vector<1x128xf32> to vector<8x128xf32>
    %23 = arith.addf %21, %22 : vector<8x128xf32>
    %cst_13 = arith.constant dense<0xFF800000> : vector<8xf32>
    %24 = vector.multi_reduction <maximumf>, %23, %cst_13 [1] : vector<8x128xf32> to vector<8xf32>
    %25 = vector.shape_cast %24 : vector<8xf32> to vector<8x1xf32>
    %26 = vector.broadcast %25 : vector<8x1xf32> to vector<8x128xf32>
    %27 = arith.subf %23, %26 : vector<8x128xf32>
    %28 = math.exp %27 : vector<8x128xf32>
    %cst_14 = arith.constant dense<0.000000e+00> : vector<8xf32>
    %29 = vector.multi_reduction <add>, %28, %cst_14 [1] : vector<8x128xf32> to vector<8xf32>
    %30 = vector.shape_cast %29 : vector<8xf32> to vector<8x1xf32>
    %31 = math.log %30 : vector<8x1xf32>
    %32 = vector.broadcast %31 : vector<8x1xf32> to vector<8x128xf32>
    %33 = arith.subf %27, %32 : vector<8x128xf32>
    %34 = vector.extract_strided_slice %33 {offsets = [0, 0], sizes = [8, 8], strides = [1, 1]} : vector<8x128xf32> to vector<8x8xf32>
    %c0_15 = arith.constant 0 : index
    %c0_16 = arith.constant 0 : index
    %35 = vector.load %arg6[%c0_15, %c0_16] : memref<8x8xf32, #tpu.memory_space<vmem>>, vector<8x8xf32>
    tpu.vector_store %arg6[%c0_15, %c0_16], %34 {strides = array<i32>} : memref<8x8xf32, #tpu.memory_space<vmem>>, vector<8x8xf32>,
    return
  }
  func.func @transform_0(%arg0: i32) -> (i32, i32) {
    %c0_i32 = arith.constant 0 : i32
    %c0_i32_0 = arith.constant 0 : i32
    return %arg0, %c0_i32 : i32, i32
  }
  func.func @transform_1(%arg0: i32) -> (i32, i32) {
    %c0_i32 = arith.constant 0 : i32
    %c0_i32_0 = arith.constant 0 : i32
    %c0_i32_1 = arith.constant 0 : i32
    return %c0_i32, %c0_i32_0 : i32, i32
  }
  func.func @transform_2(%arg0: i32) -> (i32, i32) {
    %c0_i32 = arith.constant 0 : i32
    %c0_i32_0 = arith.constant 0 : i32
    %c0_i32_1 = arith.constant 0 : i32
    return %c0_i32, %c0_i32_0 : i32, i32
  }
  func.func @transform_3(%arg0: i32) -> (i32, i32) {
    %c0_i32 = arith.constant 0 : i32
    %c0_i32_0 = arith.constant 0 : i32
    %c0_i32_1 = arith.constant 0 : i32
    return %c0_i32, %c0_i32_0 : i32, i32
  }
  func.func @transform_4(%arg0: i32) -> (i32, i32) {
    %c0_i32 = arith.constant 0 : i32
    %c0_i32_0 = arith.constant 0 : i32
    %c0_i32_1 = arith.constant 0 : i32
    return %c0_i32, %c0_i32_0 : i32, i32
  }
  func.func @transform_5(%arg0: i32) -> (i32, i32) {
    %c0_i32 = arith.constant 0 : i32
    %c0_i32_0 = arith.constant 0 : i32
    return %arg0, %c0_i32 : i32, i32
  }
}

</mosaic_0001>

<llo_original>
// kernel: tpu_custom_call.1
$region0: #{tpu_custom_call.1}
  #allocation0 [shape = 'u32[]', space=smem, size = 0x4, offset = 0x4, fixed_abs, tag = 'smem constant byte address 0x4 - core index']
  #allocation1 [shape = 'u32[144,128]{1,0:T(1,128)}', space=vmem, size = 0x12000, scoped, tag = 'internal scratch']
  %s0 = inlined_call_operand.hbm [shape: f32[8,16], index: 0, kind: input, shape index: {}]
  %s1 = inlined_call_operand.hbm [shape: bf16[16,128], index: 1, kind: input, shape index: {}]
  %s2 = inlined_call_operand.hbm [shape: bf16[128,128], index: 2, kind: input, shape index: {}]
  %s3 = inlined_call_operand.hbm [shape: bf16[128,128], index: 3, kind: input, shape index: {}]
  %s4 = inlined_call_operand.vmem [shape: f32[3,128], index: 4, kind: input, shape index: {}]
  %s5 = inlined_call_operand.hbm [shape: f32[8,8], index: 5, kind: output, shape index: {}]
  %s6 = sld [smem:[#allocation0]]
  $region46: #{tpu_custom_call.1} parent=0
    _
  %s8 = ssub.s32 1, %s6
  %s9 = scalar_select 0, %s8, %s6
  $region1: #{tpu_custom_call.1} parent=0
    #allocation2 [shape = 'u8[4096]{0}', space=vmem, size = 0x1000, scoped, tag = 'input window, operand 0, single buffered']
    #allocation3 [shape = 's32[1]{0}', space=sflag, size = 0x4, scoped, tag = 'scoped memory for tpu_custom_call.1']
    #allocation4 [shape = 's32[1]{0}', space=sflag, size = 0x4, scoped, tag = 'scoped memory for tpu_custom_call.1']
    #allocation5 [shape = 'u8[4096]{0}', space=vmem, size = 0x1000, scoped, tag = 'input window, operand 1, single buffered']
    #allocation6 [shape = 's32[1]{0}', space=sflag, size = 0x4, scoped, tag = 'scoped memory for tpu_custom_call.1']
    #allocation7 [shape = 'u8[32768]{0}', space=vmem, size = 0x8000, scoped, tag = 'input window, operand 2, single buffered']
    #allocation8 [shape = 'u8[32768]{0}', space=vmem, size = 0x8000, scoped, tag = 'input window, operand 3, single buffered']
    #allocation9 [shape = 's32[1]{0}', space=sflag, size = 0x4, scoped, tag = 'scoped memory for tpu_custom_call.1']
    #allocation10 [shape = 'u8[4096]{0}', space=vmem, size = 0x1000, scoped, tag = 'output window, operand 0, single buffered']
    %10 = vsyncpa [#allocation3], 0
    %11 = vsyncpa [#allocation6], 0
    %12 = vsyncpa [#allocation9], 0
    %13 = vsyncpa [#allocation4], 0
    // Predicated region
    $region2: #{tpu_custom_call.1} parent=1 // pred_check
      _
    $region3: #{tpu_custom_call.1} parent=1 // pred_check_branch
      %15 = sbr.rel (0) target = $region5
    $region4: #{tpu_custom_call.1} parent=1 // pred_region
      %s17 = ssub.s32 128, 128
      %18 = vsyncadd [#allocation3], %s17
      %s20 = sshll.u32 [#allocation2], 4
      %s21 = int_to_ptr.vmem [resolvable:$true] %s20
      %23 = dma.hbm_to_vmem [thread:$0]  %s0, 128, %s21, [#allocation3]
    $region5: #{tpu_custom_call.1} parent=1 // pred_fallthru
      _
    // Predicated region
    $region6: #{tpu_custom_call.1} parent=1 // pred_check
      _
    $region7: #{tpu_custom_call.1} parent=1 // pred_check_branch
      %25 = sbr.rel (0) target = $region9
    $region8: #{tpu_custom_call.1} parent=1 // pred_region
      %s27 = ssub.s32 128, 128
      %28 = vsyncadd [#allocation6], %s27
      %s29 = sshll.u32 [#allocation5], 4
      %s30 = int_to_ptr.vmem [resolvable:$true] %s29
      %35 = dma.hbm_to_vmem [thread:$0]  %s1, 128, %s30, [#allocation6], 64, 64, 4
    $region9: #{tpu_custom_call.1} parent=1 // pred_fallthru
      _
    // Predicated region
    $region10: #{tpu_custom_call.1} parent=1 // pred_check
      _
    $region11: #{tpu_custom_call.1} parent=1 // pred_check_branch
      %37 = sbr.rel (0) target = $region13
    $region12: #{tpu_custom_call.1} parent=1 // pred_region
      %s39 = ssub.s32 1024, 1024
      %40 = vsyncadd [#allocation6], %s39
      %s41 = sshll.u32 [#allocation7], 4
      %s42 = int_to_ptr.vmem [resolvable:$true] %s41
      %47 = dma.hbm_to_vmem [thread:$0]  %s2, 1024, %s42, [#allocation6], 64, 64, 4
    $region13: #{tpu_custom_call.1} parent=1 // pred_fallthru
      _
    // Predicated region
    $region14: #{tpu_custom_call.1} parent=1 // pred_check
      _
    $region15: #{tpu_custom_call.1} parent=1 // pred_check_branch
      %49 = sbr.rel (0) target = $region17
    $region16: #{tpu_custom_call.1} parent=1 // pred_region
      %s51 = ssub.s32 1024, 1024
      %52 = vsyncadd [#allocation9], %s51
      %s53 = sshll.u32 [#allocation8], 4
      %s54 = int_to_ptr.vmem [resolvable:$true] %s53
      %59 = dma.hbm_to_vmem [thread:$0]  %s3, 1024, %s54, [#allocation9], 64, 64, 4
    $region17: #{tpu_custom_call.1} parent=1 // pred_fallthru
      _
    // Predicated region
    $region18: #{tpu_custom_call.1} parent=1 // pred_check
      _
    $region19: #{tpu_custom_call.1} parent=1 // pred_check_branch
      %61 = sbr.rel (0) target = $region21
    $region20: #{tpu_custom_call.1} parent=1 // pred_region
      _
    $region21: #{tpu_custom_call.1} parent=1 // pred_fallthru
      _
    // Predicated region
    $region22: #{tpu_custom_call.1} parent=1 // pred_check
      _
    $region23: #{tpu_custom_call.1} parent=1 // pred_check_branch
      %63 = sbr.rel (0) target = $region25
    $region24: #{tpu_custom_call.1} parent=1 // pred_region
      %64 = dma.done [#allocation3], 128
    $region25: #{tpu_custom_call.1} parent=1 // pred_fallthru
      _
    // Predicated region
    $region26: #{tpu_custom_call.1} parent=1 // pred_check
      _
    $region27: #{tpu_custom_call.1} parent=1 // pred_check_branch
      %66 = sbr.rel (0) target = $region29
    $region28: #{tpu_custom_call.1} parent=1 // pred_region
      %67 = dma.done [#allocation6], 128
    $region29: #{tpu_custom_call.1} parent=1 // pred_fallthru
      _
    // Predicated region
    $region30: #{tpu_custom_call.1} parent=1 // pred_check
      _
    $region31: #{tpu_custom_call.1} parent=1 // pred_check_branch
      %69 = sbr.rel (0) target = $region33
    $region32: #{tpu_custom_call.1} parent=1 // pred_region
      %70 = dma.done [#allocation6], 1024
    $region33: #{tpu_custom_call.1} parent=1 // pred_fallthru
      _
    // Predicated region
    $region34: #{tpu_custom_call.1} parent=1 // pred_check
      _
    $region35: #{tpu_custom_call.1} parent=1 // pred_check_branch
      %72 = sbr.rel (0) target = $region37
    $region36: #{tpu_custom_call.1} parent=1 // pred_region
      %73 = dma.done [#allocation9], 1024
    $region37: #{tpu_custom_call.1} parent=1 // pred_fallthru
      _
    %v75 = vld [vmem:[%s4] sm:$0x7]
    %v76 = vld [vmem:[#allocation2] sm:$0xff]
    %v77 = vpack.c.bf16 %v76, %v76
    %v78 = vld [vmem:[#allocation5] sm:$0xf]
    %v79 = vld [vmem:[#allocation5 + $0x4] sm:$0xf]
    %v80 = vlaneseq
    %v81 = vshrl.u32 %v80, 7
    %v82 = vsub.s32 0, %v81
    %v83 = vrot.slane %v75, %v82
    %v86 = vunpack.c.l.b16 %v78
    %v87 = vunpack.c.l.b16 %v79
    %v88 = vpack.c.b16 %v87, %v86
    %vm90 = vcmask 130048
    %v92 = vsel %vm90, %v77, 0
    %94 = vmatprep.subr.bf16.mxu0 0
    %95 = vmatpush1.bf16.msra.mxu0 %v88
    %96 = vmatprep.subr.bf16.mxu0 0
    %97 = vmatpush1.bf16.msra.mxu0 0
    %98 = vmatprep.subr.bf16.mxu0 0
    %99 = vmatpush1.bf16.msra.mxu0 0
    %100 = vmatprep.subr.bf16.mxu0 0
    %101 = vmatpush1.bf16.msra.mxu0 0
    %102 = vmatprep.subr.bf16.mxu0 0
    %103 = vmatpush1.bf16.msra.mxu0 0
    %104 = vmatprep.subr.bf16.mxu0 0
    %105 = vmatpush1.bf16.msra.mxu0 0
    %106 = vmatprep.subr.bf16.mxu0 0
    %107 = vmatpush1.bf16.msra.mxu0 0
    %108 = vmatprep.subr.bf16.mxu0 0
    %109 = vmatpush1.bf16.msra.mxu0 0
    %110 = vmatprep.subr.bf16.mxu0 0
    %111 = vmatpush1.bf16.msra.mxu0 0
    %112 = vmatprep.subr.bf16.mxu0 0
    %113 = vmatpush1.bf16.msra.mxu0 0
    %114 = vmatprep.subr.bf16.mxu0 0
    %115 = vmatpush1.bf16.msra.mxu0 0
    %116 = vmatprep.subr.bf16.mxu0 0
    %117 = vmatpush1.bf16.msra.mxu0 0
    %118 = vmatprep.subr.bf16.mxu0 0
    %119 = vmatpush1.bf16.msra.mxu0 0
    %120 = vmatprep.subr.bf16.mxu0 0
    %121 = vmatpush1.bf16.msra.mxu0 0
    %122 = vmatprep.subr.bf16.mxu0 0
    %123 = vmatpush1.bf16.msra.mxu0 0
    %124 = vmatprep.subr.bf16.mxu0 0
    %125 = vmatpush1.bf16.msra.mxu0 0
    %126 = vmatprep.mubr.bf16.mxu0 0
    %127 = vmatmul.mubr.bf16.gmra.mrb[0].mxu0 %v92
    %v128 = vpop.f32.mrb[0].mxu0
    %v129 = vadd.f32 %v83, %v128
    %v130 = vpop.f32.mrb[0].mxu0
    %v131 = vpop.f32.mrb[0].mxu0
    %v132 = vpop.f32.mrb[0].mxu0
    %133 = vdwg.mxu0
    %v134 = vmax.f32 %v129, 0.0
    %v135 = vpack.c.bf16 %v134, %v134
    %v136 = vld [vmem:[#allocation7] sm:$0xf]
    %v137 = vld [vmem:[#allocation7 + $0x4] sm:$0xf]
    %v138 = vld [vmem:[#allocation7 + $0x8] sm:$0xf]
    %v139 = vld [vmem:[#allocation7 + $0xc] sm:$0xf]
    %v140 = vld [vmem:[#allocation7 + $0x10] sm:$0xf]
    %v141 = vld [vmem:[#allocation7 + $0x14] sm:$0xf]
    %v142 = vld [vmem:[#allocation7 + $0x18] sm:$0xf]
    %v143 = vld [vmem:[#allocation7 + $0x1c] sm:$0xf]
    %v144 = vld [vmem:[#allocation7 + $0x20] sm:$0xf]
    %v145 = vld [vmem:[#allocation7 + $0x24] sm:$0xf]
    %v146 = vld [vmem:[#allocation7 + $0x28] sm:$0xf]
    %v147 = vld [vmem:[#allocation7 + $0x2c] sm:$0xf]
    %v148 = vld [vmem:[#allocation7 + $0x30] sm:$0xf]
    %v149 = vld [vmem:[#allocation7 + $0x34] sm:$0xf]
    %v150 = vld [vmem:[#allocation7 + $0x38] sm:$0xf]
    %v151 = vld [vmem:[#allocation7 + $0x3c] sm:$0xf]
    %v152 = vlaneseq
    %v153 = vshrl.u32 %v152, 7
    %v154 = vsub.s32 1, %v153
    %v155 = vrot.slane %v75, %v154
    %v172 = vunpack.c.l.b16 %v136
    %v173 = vunpack.c.l.b16 %v137
    %v174 = vunpack.c.l.b16 %v138
    %v175 = vunpack.c.l.b16 %v139
    %v176 = vunpack.c.l.b16 %v140
    %v177 = vunpack.c.l.b16 %v141
    %v178 = vunpack.c.l.b16 %v142
    %v179 = vunpack.c.l.b16 %v143
    %v180 = vunpack.c.l.b16 %v144
    %v181 = vunpack.c.l.b16 %v145
    %v182 = vunpack.c.l.b16 %v146
    %v183 = vunpack.c.l.b16 %v147
    %v184 = vunpack.c.l.b16 %v148
    %v185 = vunpack.c.l.b16 %v149
    %v186 = vunpack.c.l.b16 %v150
    %v187 = vunpack.c.l.b16 %v151
    %v188 = vpack.c.b16 %v173, %v172
    %v189 = vpack.c.b16 %v175, %v174
    %v190 = vpack.c.b16 %v177, %v176
    %v191 = vpack.c.b16 %v179, %v178
    %v192 = vpack.c.b16 %v181, %v180
    %v193 = vpack.c.b16 %v183, %v182
    %v194 = vpack.c.b16 %v185, %v184
    %v195 = vpack.c.b16 %v187, %v186
    %204 = vmatprep.subr.bf16.mxu0 0
    %205 = vmatpush1.bf16.msra.mxu0 %v188
    %206 = vmatprep.subr.bf16.mxu0 0
    %207 = vmatpush1.bf16.msra.mxu0 %v189
    %208 = vmatprep.subr.bf16.mxu0 0
    %209 = vmatpush1.bf16.msra.mxu0 %v190
    %210 = vmatprep.subr.bf16.mxu0 0
    %211 = vmatpush1.bf16.msra.mxu0 %v191
    %212 = vmatprep.subr.bf16.mxu0 0
    %213 = vmatpush1.bf16.msra.mxu0 %v192
    %214 = vmatprep.subr.bf16.mxu0 0
    %215 = vmatpush1.bf16.msra.mxu0 %v193
    %216 = vmatprep.subr.bf16.mxu0 0
    %217 = vmatpush1.bf16.msra.mxu0 %v194
    %218 = vmatprep.subr.bf16.mxu0 0
    %219 = vmatpush1.bf16.msra.mxu0 %v195
    %220 = vmatprep.subr.bf16.mxu0 0
    %221 = vmatpush1.bf16.msra.mxu0 0
    %222 = vmatprep.subr.bf16.mxu0 0
    %223 = vmatpush1.bf16.msra.mxu0 0
    %224 = vmatprep.subr.bf16.mxu0 0
    %225 = vmatpush1.bf16.msra.mxu0 0
    %226 = vmatprep.subr.bf16.mxu0 0
    %227 = vmatpush1.bf16.msra.mxu0 0
    %228 = vmatprep.subr.bf16.mxu0 0
    %229 = vmatpush1.bf16.msra.mxu0 0
    %230 = vmatprep.subr.bf16.mxu0 0
    %231 = vmatpush1.bf16.msra.mxu0 0
    %232 = vmatprep.subr.bf16.mxu0 0
    %233 = vmatpush1.bf16.msra.mxu0 0
    %234 = vmatprep.subr.bf16.mxu0 0
    %235 = vmatpush1.bf16.msra.mxu0 0
    %236 = vmatprep.mubr.bf16.mxu0 0
    %237 = vmatmul.mubr.bf16.gmra.mrb[0].mxu0 %v135
    %v238 = vpop.f32.mrb[0].mxu0
    %v239 = vadd.f32 %v155, %v238
    %v240 = vpop.f32.mrb[0].mxu0
    %v241 = vpop.f32.mrb[0].mxu0
    %v242 = vpop.f32.mrb[0].mxu0
    %243 = vdwg.mxu0
    %v244 = vmax.f32 %v239, 0.0
    %v245 = vpack.c.bf16 %v244, %v244
    %v246 = vld [vmem:[#allocation8] sm:$0xf]
    %v247 = vld [vmem:[#allocation8 + $0x4] sm:$0xf]
    %v248 = vld [vmem:[#allocation8 + $0x8] sm:$0xf]
    %v249 = vld [vmem:[#allocation8 + $0xc] sm:$0xf]
    %v250 = vld [vmem:[#allocation8 + $0x10] sm:$0xf]
    %v251 = vld [vmem:[#allocation8 + $0x14] sm:$0xf]
    %v252 = vld [vmem:[#allocation8 + $0x18] sm:$0xf]
    %v253 = vld [vmem:[#allocation8 + $0x1c] sm:$0xf]
    %v254 = vld [vmem:[#allocation8 + $0x20] sm:$0xf]
    %v255 = vld [vmem:[#allocation8 + $0x24] sm:$0xf]
    %v256 = vld [vmem:[#allocation8 + $0x28] sm:$0xf]
    %v257 = vld [vmem:[#allocation8 + $0x2c] sm:$0xf]
    %v258 = vld [vmem:[#allocation8 + $0x30] sm:$0xf]
    %v259 = vld [vmem:[#allocation8 + $0x34] sm:$0xf]
    %v260 = vld [vmem:[#allocation8 + $0x38] sm:$0xf]
    %v261 = vld [vmem:[#allocation8 + $0x3c] sm:$0xf]
    %v262 = vlaneseq
    %v263 = vshrl.u32 %v262, 7
    %v264 = vsub.s32 2, %v263
    %v265 = vrot.slane %v75, %v264
    %v282 = vunpack.c.l.b16 %v246
    %v283 = vunpack.c.l.b16 %v247
    %v284 = vunpack.c.l.b16 %v248
    %v285 = vunpack.c.l.b16 %v249
    %v286 = vunpack.c.l.b16 %v250
    %v287 = vunpack.c.l.b16 %v251
    %v288 = vunpack.c.l.b16 %v252
    %v289 = vunpack.c.l.b16 %v253
    %v290 = vunpack.c.l.b16 %v254
    %v291 = vunpack.c.l.b16 %v255
    %v292 = vunpack.c.l.b16 %v256
    %v293 = vunpack.c.l.b16 %v257
    %v294 = vunpack.c.l.b16 %v258
    %v295 = vunpack.c.l.b16 %v259
    %v296 = vunpack.c.l.b16 %v260
    %v297 = vunpack.c.l.b16 %v261
    %v298 = vpack.c.b16 %v283, %v282
    %v299 = vpack.c.b16 %v285, %v284
    %v300 = vpack.c.b16 %v287, %v286
    %v301 = vpack.c.b16 %v289, %v288
    %v302 = vpack.c.b16 %v291, %v290
    %v303 = vpack.c.b16 %v293, %v292
    %v304 = vpack.c.b16 %v295, %v294
    %v305 = vpack.c.b16 %v297, %v296
    %314 = vmatprep.subr.bf16.mxu0 0
    %315 = vmatpush1.bf16.msra.mxu0 %v298
    %316 = vmatprep.subr.bf16.mxu0 0
    %317 = vmatpush1.bf16.msra.mxu0 %v299
    %318 = vmatprep.subr.bf16.mxu0 0
    %319 = vmatpush1.bf16.msra.mxu0 %v300
    %320 = vmatprep.subr.bf16.mxu0 0
    %321 = vmatpush1.bf16.msra.mxu0 %v301
    %322 = vmatprep.subr.bf16.mxu0 0
    %323 = vmatpush1.bf16.msra.mxu0 %v302
    %324 = vmatprep.subr.bf16.mxu0 0
    %325 = vmatpush1.bf16.msra.mxu0 %v303
    %326 = vmatprep.subr.bf16.mxu0 0
    %327 = vmatpush1.bf16.msra.mxu0 %v304
    %328 = vmatprep.subr.bf16.mxu0 0
    %329 = vmatpush1.bf16.msra.mxu0 %v305
    %330 = vmatprep.subr.bf16.mxu0 0
    %331 = vmatpush1.bf16.msra.mxu0 0
    %332 = vmatprep.subr.bf16.mxu0 0
    %333 = vmatpush1.bf16.msra.mxu0 0
    %334 = vmatprep.subr.bf16.mxu0 0
    %335 = vmatpush1.bf16.msra.mxu0 0
    %336 = vmatprep.subr.bf16.mxu0 0
    %337 = vmatpush1.bf16.msra.mxu0 0
    %338 = vmatprep.subr.bf16.mxu0 0
    %339 = vmatpush1.bf16.msra.mxu0 0
    %340 = vmatprep.subr.bf16.mxu0 0
    %341 = vmatpush1.bf16.msra.mxu0 0
    %342 = vmatprep.subr.bf16.mxu0 0
    %343 = vmatpush1.bf16.msra.mxu0 0
    %344 = vmatprep.subr.bf16.mxu0 0
    %345 = vmatpush1.bf16.msra.mxu0 0
    %346 = vmatprep.mubr.bf16.mxu0 0
    %347 = vmatmul.mubr.bf16.gmra.mrb[0].mxu0 %v245
    %v348 = vpop.f32.mrb[0].mxu0
    %v349 = vadd.f32 %v265, %v348
    %v350 = vpop.f32.mrb[0].mxu0
    %v351 = vpop.f32.mrb[0].mxu0
    %v352 = vpop.f32.mrb[0].mxu0
    %353 = vdwg.mxu0
    %354 = vmax.xlane.f32.xlu0 %v349
    %v355 = vpop.xlane.xlu0 %354
    %v356 = vsub.f32 %v349, %v355
    %v357 = vmul.f32 %v356, 1.442695
    %v358 = vpow.pop %v357
    %359 = vadd.xlane.f32.xlu0 %v358
    %v360 = vpop.xlane.xlu0 %359
    %v361 = vlog2.pop %v360
    %v362 = vmul.f32 %v361, 0.6931472
    %v363 = vsub.f32 %v356, %v362
    %vm364 = vcmask 64512
    %365 = vst.msk [vmem:[#allocation10] sm:$0xff] %vm364, %v363
    // Predicated region
    $region38: #{tpu_custom_call.1} parent=1 // pred_check
      _
    $region39: #{tpu_custom_call.1} parent=1 // pred_check_branch
      %367 = sbr.rel (0) target = $region41
    $region40: #{tpu_custom_call.1} parent=1 // pred_region
      %s369 = ssub.s32 128, 128
      %370 = vsyncadd [#allocation4], %s369
      %s372 = sshll.u32 [#allocation10], 4
      %s373 = int_to_ptr.vmem [resolvable:$true] %s372
      %375 = dma.vmem_to_hbm [thread:$0]  %s373, 128, %s5, [#allocation4]
    $region41: #{tpu_custom_call.1} parent=1 // pred_fallthru
      _
    // Predicated region
    $region42: #{tpu_custom_call.1} parent=1 // pred_check
      _
    $region43: #{tpu_custom_call.1} parent=1 // pred_check_branch
      %377 = sbr.rel (0) target = $region45
    $region44: #{tpu_custom_call.1} parent=1 // pred_region
      %378 = dma.done [#allocation4], 128
    $region45: #{tpu_custom_call.1} parent=1 // pred_fallthru
      _
    %379 = vsyncpa [#allocation3], 1
    %380 = vsyncpa [#allocation6], 1
    %381 = vsyncpa [#allocation9], 1
    %382 = vsyncpa [#allocation4], 1

</llo_original>
